<compile_context>
chip_gen: v5e
topology: v5e:2x2
jax: 0.10.0
libtpu: 0.0.40
codegen_flags: <defaults>
</compile_context>

<pallas_src>
import functools

import jax
import jax.numpy as jnp
from jax.experimental import pallas as pl
from jax.experimental.pallas import tpu as pltpu


def _round_up(x: int, m: int) -> int:
    return ((x + m - 1) // m) * m


def _subnet_kernel(x_ref, w1_ref, b1_ref, w2_ref, b2_ref, o_ref, h_ref):
    # GEMM1 + bias + ReLU once per batch tile (only at the first N tile),
    # cached in VMEM scratch and reused across all N tiles.
    @pl.when(pl.program_id(1) == 0)
    def _():
        h = jnp.dot(x_ref[...], w1_ref[...], preferred_element_type=jnp.float32)
        h = jnp.maximum(h + b1_ref[...], 0.0)   # bias + ReLU epilogue in f32
        # dropout: identity at inference -> no-op
        h_ref[...] = h.astype(h_ref.dtype)

    # GEMM2 for this (batch tile, N tile): (tb, K) @ (K, tn), f32 accumulation.
    y = jnp.dot(h_ref[...], w2_ref[...], preferred_element_type=jnp.float32)
    o_ref[...] = (y + b2_ref[...]).astype(o_ref.dtype)


def prepare_params(w1, b1, w2, b2, compute_dtype=jnp.bfloat16):
    """One-time weight prep: transpose to math order, pad to (8,128) tiles, cast.

    w1: (in_size, in_size), b1: (in_size,)   (PyTorch nn.Linear convention)
    w2: (out_size, in_size), b2: (out_size,)
    Returns a tuple reusable across many forward calls.
    """
    in_size = w1.shape[0]
    out_size = w2.shape[0]
    K_pad = _round_up(in_size, 128)
    N_pad = _round_up(out_size, 128)

    w1t = jnp.zeros((K_pad, K_pad), compute_dtype).at[:in_size, :in_size].set(
        w1.T.astype(compute_dtype))
    w2t = jnp.zeros((K_pad, N_pad), compute_dtype).at[:in_size, :out_size].set(
        w2.T.astype(compute_dtype))
    # Biases stay f32 (epilogue precision); zero padding keeps padded lanes exact.
    b1p = jnp.zeros((1, K_pad), jnp.float32).at[0, :in_size].set(
        b1.astype(jnp.float32))
    b2p = jnp.zeros((1, N_pad), jnp.float32).at[0, :out_size].set(
        b2.astype(jnp.float32))
    return (w1t, b1p, w2t, b2p, in_size, out_size)


@functools.partial(jax.jit,
                   static_argnames=("in_size", "out_size", "block_b", "block_n"))
def _forward(x, w1t, b1p, w2t, b2p, *, in_size, out_size,
             block_b=512, block_n=512):
    out_dtype = x.dtype
    compute_dtype = w1t.dtype
    cdb = jnp.dtype(compute_dtype).itemsize
    odb = jnp.dtype(out_dtype).itemsize
    K_pad = w1t.shape[0]
    N_pad = w2t.shape[1]

    # Flatten leading dims (nn.Linear semantics).
    lead_shape = x.shape[:-1]
    x2 = x.reshape(-1, in_size)
    B = x2.shape[0]

    # --- Batch tile: multiple of 8, balanced across tiles (no 2x pad blow-up).
    blk = max(8, (int(block_b) // 8) * 8)
    B8 = _round_up(max(B, 1), 8)
    if B8 <= blk:
        tb = B8
    else:
        n_btiles = -(-B8 // blk)
        tb = _round_up(-(-B8 // n_btiles), 8)

    # --- N tile: multiple of 128 that divides N_pad.
    tn = min(N_pad, max(128, (int(block_n) // 128) * 128))
    while N_pad % tn != 0:
        tn -= 128

    # --- VMEM budget (double-buffered streams + resident weights + h scratch);
    # shrink tb to stay under ~48 MiB so it also fits v7x's 64 MiB per-TC VMEM.
    def vmem_budget(tb_):
        return (2 * tb_ * K_pad * cdb        # x tiles (double buffered)
                + 2 * K_pad * K_pad * cdb    # W1 (constant index; assume 2 bufs)
                + 2 * K_pad * tn * cdb       # W2 tile
                + 2 * tb_ * tn * odb         # output tile
                + tb_ * K_pad * cdb          # h scratch
                + 4 * (K_pad + N_pad) * 4)   # biases

    target = 48 << 20
    while tb > 8 and vmem_budget(tb) > target:
        tb = max(8, ((tb // 2) // 8) * 8)

    n_btiles = -(-B8 // tb)
    B_pad = n_btiles * tb

    # --- Activation: cast to compute dtype; pad only if needed (fast path).
    if (B_pad != B) or (K_pad != in_size):
        x_p = jnp.zeros((B_pad, K_pad), compute_dtype).at[:B, :in_size].set(
            x2.astype(compute_dtype))
    else:
        x_p = x2.astype(compute_dtype)

    grid = (B_pad // tb, N_pad // tn)

    flops = 2 * B_pad * K_pad * K_pad + 2 * B_pad * K_pad * N_pad
    bytes_accessed = (x_p.size * cdb + w1t.size * cdb + w2t.size * cdb
                      + (K_pad + N_pad) * 4 + B_pad * N_pad * odb)
    vmem_limit = int(min(max(32 << 20, int(1.5 * vmem_budget(tb)) + (2 << 20)),
                         96 << 20))

    out_p = pl.pallas_call(
        _subnet_kernel,
        out_shape=jax.ShapeDtypeStruct((B_pad, N_pad), out_dtype),
        grid=grid,
        in_specs=[
            # batch-tiled activation
            pl.BlockSpec((tb, K_pad), lambda i, j: (i, 0)),
            # W1 / b1: constant block index -> DMA'd once, resident in VMEM
            pl.BlockSpec((K_pad, K_pad), lambda i, j: (0, 0)),
            pl.BlockSpec((1, K_pad), lambda i, j: (0, 0)),
            # W2 / b2: tiled over N
            pl.BlockSpec((K_pad, tn), lambda i, j: (0, j)),
            pl.BlockSpec((1, tn), lambda i, j: (0, j)),
        ],
        out_specs=pl.BlockSpec((tb, tn), lambda i, j: (i, j)),
        scratch_shapes=[pltpu.VMEM((tb, K_pad), compute_dtype)],  # cached h
        compiler_params=pltpu.CompilerParams(
            dimension_semantics=("parallel", "arbitrary"),
            vmem_limit_bytes=vmem_limit,
        ),
        cost_estimate=pl.CostEstimate(
            flops=flops, transcendentals=0, bytes_accessed=bytes_accessed),
    )(x_p, w1t, b1p, w2t, b2p)

    # Strip padding (skipped when already aligned) and restore leading dims.
    if (B_pad != B) or (N_pad != out_size):
        out = out_p[:B, :out_size]
    else:
        out = out_p
    return out.reshape(*lead_shape, out_size)


def inference_subnet_prepared(x, params, *, block_b=512, block_n=512):
    """Forward pass using pre-prepared (padded / transposed / cast) params."""
    w1t, b1p, w2t, b2p, in_size, out_size = params
    return _forward(x, w1t, b1p, w2t, b2p, in_size=in_size, out_size=out_size,
                    block_b=block_b, block_n=block_n)


def inference_subnet(x, w1, b1, w2, b2, *, compute_dtype=jnp.bfloat16,
                     block_b=512, block_n=512):
    """One-shot convenience wrapper (prep + forward). Prefer prepare_params()
    once + inference_subnet_prepared() in a serving loop."""
    params = prepare_params(w1, b1, w2, b2, compute_dtype=compute_dtype)
    return inference_subnet_prepared(x, params, block_b=block_b, block_n=block_n)


def init_params(key, in_size, out_size, dtype=jnp.float32):
    """Deterministic init mimicking torch.nn.Linear (uniform +/- 1/sqrt(fan_in))."""
    k1, k2, k3, k4 = jax.random.split(key, 4)
    bound = 1.0 / (in_size ** 0.5)
    w1 = jax.random.uniform(k1, (in_size, in_size), dtype, -bound, bound)
    b1 = jax.random.uniform(k2, (in_size,), dtype, -bound, bound)
    w2 = jax.random.uniform(k3, (out_size, in_size), dtype, -bound, bound)
    b2 = jax.random.uniform(k4, (out_size,), dtype, -bound, bound)
    return w1, b1, w2, b2


if __name__ == "__main__":
    key = jax.random.PRNGKey(0)
    kx, kp = jax.random.split(key)

    B, in_size, out_size = 8, 32, 16
    x = jax.random.normal(kx, (B, in_size), jnp.float32)
    w1, b1, w2, b2 = init_params(kp, in_size, out_size)

    # Pure-JAX reference (PyTorch forward semantics; dropout is identity at eval).
    ref = jnp.maximum(x @ w1.T + b1, 0.0) @ w2.T + b2

    # f32 path: exact check of the kernel math.
    p32 = prepare_params(w1, b1, w2, b2, compute_dtype=jnp.float32)
    out32 = jax.block_until_ready(inference_subnet_prepared(x, p32))
    assert out32.shape == (B, out_size)
    assert jnp.allclose(out32, ref, atol=1e-5, rtol=1e-5), "f32 path mismatch"

    # Default bf16 MXU path (f32 accumulation + f32 epilogue): prep once, reuse.
    pbf = prepare_params(w1, b1, w2, b2)  # bf16 weights by default
    outbf = jax.block_until_ready(inference_subnet_prepared(x, pbf))
    assert outbf.shape == (B, out_size)
    # Known ~1e-2-level error source: h is downcast to bf16 before GEMM2.
    assert jnp.allclose(outbf, ref, atol=3e-2, rtol=3e-2), "bf16 path mismatch"

    print("KERNEL_OK")
</pallas_src>

<mosaic_0001>
module attributes {stable_mosaic.version = 11 : i64} {
  func.func @_subnet_kernel(%arg0: i32, %arg1: i32, %arg2: memref<8x128xf32, #tpu.memory_space<vmem>>, %arg3: memref<128x128xf32, #tpu.memory_space<vmem>>, %arg4: memref<1x128xf32, #tpu.memory_space<vmem>>, %arg5: memref<128x128xf32, #tpu.memory_space<vmem>>, %arg6: memref<1x128xf32, #tpu.memory_space<vmem>>, %arg7: memref<8x128xf32, #tpu.memory_space<vmem>>, %arg8: memref<8x128xf32, #tpu.memory_space<vmem>>) attributes {dimension_semantics = [#tpu.dimension_semantics<parallel>, #tpu.dimension_semantics<arbitrary>], iteration_bounds = array<i64: 1, 1>, scalar_prefetch = 0 : i64, scratch_operands = 1 : i64, tpu.core_type = #tpu.core_type<tc>, window_params = [{transform_indices = @transform_0, window_bounds = array<i64: 8, 128>}, {pipeline_mode = #tpu.pipeline_mode<synchronous>, transform_indices = @transform_1, window_bounds = array<i64: 128, 128>}, {pipeline_mode = #tpu.pipeline_mode<synchronous>, transform_indices = @transform_2, window_bounds = array<i64: 1, 128>}, {transform_indices = @transform_3, window_bounds = array<i64: 128, 128>}, {transform_indices = @transform_4, window_bounds = array<i64: 1, 128>}, {transform_indices = @transform_5, window_bounds = array<i64: 8, 128>}]} {
    %c0_i32 = arith.constant 0 : i32
    %0 = arith.cmpi eq, %arg1, %c0_i32 : i32
    %1 = arith.extui %0 : i1 to i32
    %c0_i32_0 = arith.constant 0 : i32
    %2 = arith.cmpi ne, %1, %c0_i32_0 : i32
    scf.if %2 {
      %c0_8 = arith.constant 0 : index
      %c0_9 = arith.constant 0 : index
      %10 = vector.load %arg2[%c0_8, %c0_9] : memref<8x128xf32, #tpu.memory_space<vmem>>, vector<8x128xf32>
      %c0_10 = arith.constant 0 : index
      %c0_11 = arith.constant 0 : index
      %11 = vector.load %arg3[%c0_10, %c0_11] : memref<128x128xf32, #tpu.memory_space<vmem>>, vector<128x128xf32>
      %cst_12 = arith.constant dense<0.000000e+00> : vector<8x128xf32>
      %12 = tpu.matmul %10, %11, %cst_12 {dimension_numbers = #tpu.dot_dimension_numbers<[1], [0], [0], [1], [0, 0, 1, 1], [], []>} : vector<8x128xf32>, vector<128x128xf32>, vector<8x128xf32> -> vector<8x128xf32>
      %c0_13 = arith.constant 0 : index
      %c0_14 = arith.constant 0 : index
      %13 = vector.load %arg4[%c0_13, %c0_14] : memref<1x128xf32, #tpu.memory_space<vmem>>, vector<1x128xf32>
      %14 = vector.broadcast %13 : vector<1x128xf32> to vector<8x128xf32>
      %15 = arith.addf %12, %14 : vector<8x128xf32>
      %cst_15 = arith.constant 0.000000e+00 : f32
      %16 = vector.broadcast %cst_15 : f32 to vector<8x128xf32>
      %17 = arith.maximumf %15, %16 : vector<8x128xf32>
      %c0_16 = arith.constant 0 : index
      %c0_17 = arith.constant 0 : index
      %18 = vector.load %arg8[%c0_16, %c0_17] : memref<8x128xf32, #tpu.memory_space<vmem>>, vector<8x128xf32>
      tpu.vector_store %arg8[%c0_16, %c0_17], %17 {strides = array<i32>} : memref<8x128xf32, #tpu.memory_space<vmem>>, vector<8x128xf32>,
    } else {
    }
    %c0 = arith.constant 0 : index
    %c0_1 = arith.constant 0 : index
    %3 = vector.load %arg8[%c0, %c0_1] : memref<8x128xf32, #tpu.memory_space<vmem>>, vector<8x128xf32>
    %c0_2 = arith.constant 0 : index
    %c0_3 = arith.constant 0 : index
    %4 = vector.load %arg5[%c0_2, %c0_3] : memref<128x128xf32, #tpu.memory_space<vmem>>, vector<128x128xf32>
    %cst = arith.constant dense<0.000000e+00> : vector<8x128xf32>
    %5 = tpu.matmul %3, %4, %cst {dimension_numbers = #tpu.dot_dimension_numbers<[1], [0], [0], [1], [0, 0, 1, 1], [], []>} : vector<8x128xf32>, vector<128x128xf32>, vector<8x128xf32> -> vector<8x128xf32>
    %c0_4 = arith.constant 0 : index
    %c0_5 = arith.constant 0 : index
    %6 = vector.load %arg6[%c0_4, %c0_5] : memref<1x128xf32, #tpu.memory_space<vmem>>, vector<1x128xf32>
    %7 = vector.broadcast %6 : vector<1x128xf32> to vector<8x128xf32>
    %8 = arith.addf %5, %7 : vector<8x128xf32>
    %c0_6 = arith.constant 0 : index
    %c0_7 = arith.constant 0 : index
    %9 = vector.load %arg7[%c0_6, %c0_7] : memref<8x128xf32, #tpu.memory_space<vmem>>, vector<8x128xf32>
    tpu.vector_store %arg7[%c0_6, %c0_7], %8 {strides = array<i32>} : memref<8x128xf32, #tpu.memory_space<vmem>>, vector<8x128xf32>,
    return
  }
  func.func @transform_0(%arg0: i32, %arg1: i32) -> (i32, i32) {
    %c0_i32 = arith.constant 0 : i32
    %c0_i32_0 = arith.constant 0 : i32
    return %arg0, %c0_i32 : i32, i32
  }
  func.func @transform_1(%arg0: i32, %arg1: i32) -> (i32, i32) {
    %c0_i32 = arith.constant 0 : i32
    %c0_i32_0 = arith.constant 0 : i32
    %c0_i32_1 = arith.constant 0 : i32
    return %c0_i32, %c0_i32_0 : i32, i32
  }
  func.func @transform_2(%arg0: i32, %arg1: i32) -> (i32, i32) {
    %c0_i32 = arith.constant 0 : i32
    %c0_i32_0 = arith.constant 0 : i32
    %c0_i32_1 = arith.constant 0 : i32
    return %c0_i32, %c0_i32_0 : i32, i32
  }
  func.func @transform_3(%arg0: i32, %arg1: i32) -> (i32, i32) {
    %c0_i32 = arith.constant 0 : i32
    %c0_i32_0 = arith.constant 0 : i32
    return %c0_i32, %arg1 : i32, i32
  }
  func.func @transform_4(%arg0: i32, %arg1: i32) -> (i32, i32) {
    %c0_i32 = arith.constant 0 : i32
    %c0_i32_0 = arith.constant 0 : i32
    return %c0_i32, %arg1 : i32, i32
  }
  func.func @transform_5(%arg0: i32, %arg1: i32) -> (i32, i32) {
    %c0_i32 = arith.constant 0 : i32
    return %arg0, %arg1 : i32, i32
  }
}

</mosaic_0001>

<llo_original>
// kernel: _forward.1
$region0: #{_forward.1}
  #allocation0 [shape = 'u32[]', space=smem, size = 0x4, offset = 0x4, fixed_abs, tag = 'smem constant byte address 0x4 - core index']
  #allocation1 [shape = 'u32[72,128]{1,0:T(1,128)}', space=vmem, size = 0x9000, scoped, tag = 'internal scratch']
  #allocation2 [shape = 'f32[8,128]{1,0:T(8,128)}', space=vmem, size = 0x1000, scoped, tag = 'scratch operand']
  %s0 = inlined_call_operand.vmem [shape: f32[8,128], index: 0, kind: input, shape index: {}]
  %s1 = inlined_call_operand.hbm [shape: f32[128,128], index: 1, kind: input, shape index: {}]
  %s2 = inlined_call_operand.vmem [shape: f32[1,128], index: 2, kind: input, shape index: {}]
  %s3 = inlined_call_operand.hbm [shape: f32[128,128], index: 3, kind: input, shape index: {}]
  %s4 = inlined_call_operand.vmem [shape: f32[1,128], index: 4, kind: input, shape index: {}]
  %s5 = inlined_call_operand.hbm [shape: f32[8,128], index: 5, kind: output, shape index: {}]
  %s6 = sld [smem:[#allocation0]]
  $region42: #{_forward.1} parent=0
    _
  %s8 = ssub.s32 1, %s6
  %s9 = scalar_select 0, %s8, %s6
  $region1: #{_forward.1} parent=0
    #allocation3 [shape = 'u8[65536]{0}', space=vmem, size = 0x10000, scoped, tag = 'input window, operand 1, single buffered']
    #allocation4 [shape = 's32[1]{0}', space=sflag, size = 0x4, scoped, tag = 'scoped memory for _forward.1']
    #allocation5 [shape = 's32[1]{0}', space=sflag, size = 0x4, scoped, tag = 'scoped memory for _forward.1']
    #allocation6 [shape = 'u8[65536]{0}', space=vmem, size = 0x10000, scoped, tag = 'input window, operand 3, single buffered']
    #allocation7 [shape = 's32[1]{0}', space=sflag, size = 0x4, scoped, tag = 'scoped memory for _forward.1']
    #allocation8 [shape = 'u8[4096]{0}', space=vmem, size = 0x1000, scoped, tag = 'output window, operand 0, single buffered']
    %10 = vsyncpa [#allocation4], 0
    %11 = vsyncpa [#allocation7], 0
    %12 = vsyncpa [#allocation5], 0
    // Predicated region
    $region2: #{_forward.1} parent=1 // pred_check
      _
    $region3: #{_forward.1} parent=1 // pred_check_branch
      %14 = sbr.rel (0) target = $region5
    $region4: #{_forward.1} parent=1 // pred_region
      _
    $region5: #{_forward.1} parent=1 // pred_fallthru
      _
    // Predicated region
    $region6: #{_forward.1} parent=1 // pred_check
      _
    $region7: #{_forward.1} parent=1 // pred_check_branch
      %16 = sbr.rel (0) target = $region9
    $region8: #{_forward.1} parent=1 // pred_region
      %18 = vsyncadd [#allocation4], 0
      %s19 = sshll.u32 %s1, 4
      %s20 = int_to_ptr.hbm [resolvable:$true] %s19
      %s21 = sshll.u32 [#allocation3], 4
      %s22 = int_to_ptr.vmem [resolvable:$true] %s21
      %27 = dma.hbm_to_vmem [thread:$0]  %s20, 2048, %s22, [#allocation4], 128, 128, 8
    $region9: #{_forward.1} parent=1 // pred_fallthru
      _
    // Predicated region
    $region10: #{_forward.1} parent=1 // pred_check
      _
    $region11: #{_forward.1} parent=1 // pred_check_branch
      %29 = sbr.rel (0) target = $region13
    $region12: #{_forward.1} parent=1 // pred_region
      _
    $region13: #{_forward.1} parent=1 // pred_fallthru
      _
    // Predicated region
    $region14: #{_forward.1} parent=1 // pred_check
      _
    $region15: #{_forward.1} parent=1 // pred_check_branch
      %31 = sbr.rel (0) target = $region17
    $region16: #{_forward.1} parent=1 // pred_region
      %33 = vsyncadd [#allocation7], 0
      %s34 = sshll.u32 %s3, 4
      %s35 = int_to_ptr.hbm [resolvable:$true] %s34
      %s36 = sshll.u32 [#allocation6], 4
      %s37 = int_to_ptr.vmem [resolvable:$true] %s36
      %42 = dma.hbm_to_vmem [thread:$0]  %s35, 2048, %s37, [#allocation7], 128, 128, 8
    $region17: #{_forward.1} parent=1 // pred_fallthru
      _
    // Predicated region
    $region18: #{_forward.1} parent=1 // pred_check
      _
    $region19: #{_forward.1} parent=1 // pred_check_branch
      %44 = sbr.rel (0) target = $region21
    $region20: #{_forward.1} parent=1 // pred_region
      _
    $region21: #{_forward.1} parent=1 // pred_fallthru
      _
    // Predicated region
    $region22: #{_forward.1} parent=1 // pred_check
      _
    $region23: #{_forward.1} parent=1 // pred_check_branch
      %46 = sbr.rel (0) target = $region25
    $region24: #{_forward.1} parent=1 // pred_region
      %48 = dma.done [#allocation4], 2048
    $region25: #{_forward.1} parent=1 // pred_fallthru
      _
    // Predicated region
    $region26: #{_forward.1} parent=1 // pred_check
      _
    $region27: #{_forward.1} parent=1 // pred_check_branch
      %50 = sbr.rel (0) target = $region29
    $region28: #{_forward.1} parent=1 // pred_region
      %52 = dma.done [#allocation7], 2048
    $region29: #{_forward.1} parent=1 // pred_fallthru
      _
    %p53 = scmp.eq.s32.totalorder 0, 0
    // Predicated region
    $region30: #{_forward.1} parent=1 // pred_check
      %p54 = pneg %p53
    $region31: #{_forward.1} parent=1 // pred_check_branch
      %56 = sbr.rel (%p54) target = $region33
    $region32: #{_forward.1} parent=1 // pred_region
      %v57 = vld [vmem:[%s0] sm:$0xff]
      %v58 = vld [vmem:[#allocation3] sm:$0xff]
      %v59 = vld [vmem:[#allocation3 + $0x8] sm:$0xff]
      %v60 = vld [vmem:[#allocation3 + $0x10] sm:$0xff]
      %v61 = vld [vmem:[#allocation3 + $0x18] sm:$0xff]
      %v62 = vld [vmem:[#allocation3 + $0x20] sm:$0xff]
      %v63 = vld [vmem:[#allocation3 + $0x28] sm:$0xff]
      %v64 = vld [vmem:[#allocation3 + $0x30] sm:$0xff]
      %v65 = vld [vmem:[#allocation3 + $0x38] sm:$0xff]
      %v66 = vld [vmem:[#allocation3 + $0x40] sm:$0xff]
      %v67 = vld [vmem:[#allocation3 + $0x48] sm:$0xff]
      %v68 = vld [vmem:[#allocation3 + $0x50] sm:$0xff]
      %v69 = vld [vmem:[#allocation3 + $0x58] sm:$0xff]
      %v70 = vld [vmem:[#allocation3 + $0x60] sm:$0xff]
      %v71 = vld [vmem:[#allocation3 + $0x68] sm:$0xff]
      %v72 = vld [vmem:[#allocation3 + $0x70] sm:$0xff]
      %v73 = vld [vmem:[#allocation3 + $0x78] sm:$0xff]
      %v74 = vld [vmem:[%s2] sm:$0x1]
      %v76 = vperm.slane %v74, 0
      %78 = vmatpush.msra.mxu0 %v73
      %79 = vmatpush.msra.mxu0 %v72
      %80 = vmatpush.msra.mxu0 %v71
      %81 = vmatpush.msra.mxu0 %v70
      %82 = vmatpush.msra.mxu0 %v69
      %83 = vmatpush.msra.mxu0 %v68
      %84 = vmatpush.msra.mxu0 %v67
      %85 = vmatpush.msra.mxu0 %v66
      %86 = vmatpush.msra.mxu0 %v65
      %87 = vmatpush.msra.mxu0 %v64
      %88 = vmatpush.msra.mxu0 %v63
      %89 = vmatpush.msra.mxu0 %v62
      %90 = vmatpush.msra.mxu0 %v61
      %91 = vmatpush.msra.mxu0 %v60
      %92 = vmatpush.msra.mxu0 %v59
      %93 = vmatpush.msra.mxu0 %v58
      %94 = vmatmul.f32.gmra.mxu0 %v57
      %v95 = vpop.f32.mrf.mxu0
      %v96 = vadd.f32 %v76, %v95
      %97 = vdwg.mxu0
      %v98 = vmax.f32 %v96, 0.0
      %99 = vst [vmem:[#allocation2] sm:$0xff] %v98
    $region33: #{_forward.1} parent=1 // pred_fallthru
      _
    %v100 = vld [vmem:[#allocation2] sm:$0xff]
    %v101 = vld [vmem:[#allocation6] sm:$0xff]
    %v102 = vld [vmem:[#allocation6 + $0x8] sm:$0xff]
    %v103 = vld [vmem:[#allocation6 + $0x10] sm:$0xff]
    %v104 = vld [vmem:[#allocation6 + $0x18] sm:$0xff]
    %v105 = vld [vmem:[#allocation6 + $0x20] sm:$0xff]
    %v106 = vld [vmem:[#allocation6 + $0x28] sm:$0xff]
    %v107 = vld [vmem:[#allocation6 + $0x30] sm:$0xff]
    %v108 = vld [vmem:[#allocation6 + $0x38] sm:$0xff]
    %v109 = vld [vmem:[#allocation6 + $0x40] sm:$0xff]
    %v110 = vld [vmem:[#allocation6 + $0x48] sm:$0xff]
    %v111 = vld [vmem:[#allocation6 + $0x50] sm:$0xff]
    %v112 = vld [vmem:[#allocation6 + $0x58] sm:$0xff]
    %v113 = vld [vmem:[#allocation6 + $0x60] sm:$0xff]
    %v114 = vld [vmem:[#allocation6 + $0x68] sm:$0xff]
    %v115 = vld [vmem:[#allocation6 + $0x70] sm:$0xff]
    %v116 = vld [vmem:[#allocation6 + $0x78] sm:$0xff]
    %v117 = vld [vmem:[%s4] sm:$0x1]
    %v119 = vperm.slane %v117, 0
    %121 = vmatpush.msra.mxu0 %v116
    %122 = vmatpush.msra.mxu0 %v115
    %123 = vmatpush.msra.mxu0 %v114
    %124 = vmatpush.msra.mxu0 %v113
    %125 = vmatpush.msra.mxu0 %v112
    %126 = vmatpush.msra.mxu0 %v111
    %127 = vmatpush.msra.mxu0 %v110
    %128 = vmatpush.msra.mxu0 %v109
    %129 = vmatpush.msra.mxu0 %v108
    %130 = vmatpush.msra.mxu0 %v107
    %131 = vmatpush.msra.mxu0 %v106
    %132 = vmatpush.msra.mxu0 %v105
    %133 = vmatpush.msra.mxu0 %v104
    %134 = vmatpush.msra.mxu0 %v103
    %135 = vmatpush.msra.mxu0 %v102
    %136 = vmatpush.msra.mxu0 %v101
    %137 = vmatmul.f32.gmra.mxu0 %v100
    %v138 = vpop.f32.mrf.mxu0
    %v139 = vadd.f32 %v119, %v138
    %140 = vdwg.mxu0
    %141 = vst [vmem:[#allocation8] sm:$0xff] %v139
    // Predicated region
    $region34: #{_forward.1} parent=1 // pred_check
      _
    $region35: #{_forward.1} parent=1 // pred_check_branch
      %143 = sbr.rel (0) target = $region37
    $region36: #{_forward.1} parent=1 // pred_region
      %145 = vsyncadd [#allocation5], 0
      %s147 = sshll.u32 [#allocation8], 4
      %s148 = int_to_ptr.vmem [resolvable:$true] %s147
      %s149 = sshll.u32 %s5, 4
      %s150 = int_to_ptr.hbm [resolvable:$true] %s149
      %152 = dma.vmem_to_hbm [thread:$0]  %s148, 128, %s150, [#allocation5]
    $region37: #{_forward.1} parent=1 // pred_fallthru
      _
    // Predicated region
    $region38: #{_forward.1} parent=1 // pred_check
      _
    $region39: #{_forward.1} parent=1 // pred_check_branch
      %154 = sbr.rel (0) target = $region41
    $region40: #{_forward.1} parent=1 // pred_region
      %156 = dma.done [#allocation5], 128
    $region41: #{_forward.1} parent=1 // pred_fallthru
      _
    %157 = vsyncpa [#allocation4], 1
    %158 = vsyncpa [#allocation7], 1
    %159 = vsyncpa [#allocation5], 1

</llo_original>
